<compile_context>
chip_gen: v7x
topology: tpu7x:2x2x1
jax: 0.10.0
libtpu: 0.0.40
codegen_flags: <defaults>
</compile_context>

<pallas_src>
import functools
import math

import jax
import jax.numpy as jnp
from jax.experimental import pallas as pl
from jax.experimental.pallas import tpu as pltpu

_MASK_VALUE = -1e30   # finite "-inf": keeps max/exp NaN-free even for tiny B
_OUT_LANES = 128      # lane-dense per-row-loss output width


def _ntxent_kernel(q_ref, k_ref, part_ref, loss_ref, m_ref, l_ref, *,
                   block_q, block_k, keys_resident):
    qi = pl.program_id(0)
    ki = pl.program_id(1)
    nk = pl.num_programs(1)

    @pl.when(ki == 0)
    def _init():
        m_ref[...] = jnp.full_like(m_ref, _MASK_VALUE)
        l_ref[...] = jnp.zeros_like(l_ref)

    # Inputs are already L2-normalized, scaled by sqrt(1/t) and cast to the
    # compute dtype in the wrapper — no per-step rsqrt/sum/mul here.
    q = q_ref[...]                                        # (block_q, D)
    if keys_resident:
        start = pl.multiple_of(ki * block_k, block_k)
        k = k_ref[pl.ds(start, block_k), :]               # slice resident slab
    else:
        k = k_ref[...]                                    # streamed (block_k, D)

    # Similarity tile on the MXU; 1/t is already folded into the operands.
    s = jax.lax.dot_general(q, k, (((1,), (1,)), ((), ())),
                            preferred_element_type=jnp.float32)

    def _online_update(s_tile):
        m_prev = m_ref[...]
        m_new = jnp.maximum(m_prev, jnp.max(s_tile, axis=1, keepdims=True))
        l_ref[...] = (l_ref[...] * jnp.exp(m_prev - m_new)
                      + jnp.sum(jnp.exp(s_tile - m_new), axis=1, keepdims=True))
        m_ref[...] = m_new

    # Only pay for the self-similarity mask on tiles the global diagonal touches.
    q_lo = qi * block_q
    k_lo = ki * block_k
    diag_hits = jnp.logical_and(q_lo < k_lo + block_k, k_lo < q_lo + block_q)

    @pl.when(diag_hits)
    def _masked_update():
        row = q_lo + jax.lax.broadcasted_iota(jnp.int32, s.shape, 0)
        col = k_lo + jax.lax.broadcasted_iota(jnp.int32, s.shape, 1)
        _online_update(jnp.where(row == col, jnp.float32(_MASK_VALUE), s))

    @pl.when(jnp.logical_not(diag_hits))
    def _plain_update():
        _online_update(s)

    @pl.when(ki == nk - 1)
    def _finalize():
        # Positive logit from the SAME compute_dtype operands as the matmul,
        # accumulated in f32 on the VPU (consistent softmax numerator/denominator).
        p = part_ref[...]
        pos = jnp.sum(q.astype(jnp.float32) * p.astype(jnp.float32),
                      axis=1, keepdims=True)
        loss = (m_ref[...] + jnp.log(l_ref[...])) - pos            # (block_q, 1)
        # Lane-dense (unmasked) store: broadcast the column across 128 lanes.
        loss_ref[...] = jnp.broadcast_to(loss, (block_q, _OUT_LANES))


def _pick_block(n, cap):
    """Largest divisor of n <= cap, preferring 256-, then 128-, then 8-aligned."""
    cap = max(8, min(cap, n))
    for align in (256, 128, 8):
        t = (cap // align) * align
        while t >= align:
            if n % t == 0:
                return t
            t -= align
    return n   # ragged fallback: full-extent block is always legal


def _vmem_capacity_bytes():
    """Per-TensorCore VMEM capacity; conservative 64 MiB (v7x) fallback."""
    try:
        info = pltpu.get_tpu_info()
        cap = getattr(info, "vmem_capacity_bytes", None)
        if cap:
            return int(cap)
    except Exception:
        pass
    return 64 * 1024 * 1024


def ntxent_loss(out0, out1, temperature=0.5, *, compute_dtype=jnp.bfloat16,
                block_q=None, block_k=None, keys_resident=None):
    """SimCLR NT-Xent loss (memory_bank_size=0, no distributed gather).

    compute_dtype=jnp.bfloat16 is the production path on v5e/v6e/v7x (bf16 MXU
    operands, f32 accumulation); jnp.float32 is kept only as a validation mode.
    """
    assert abs(float(temperature)) >= 1e-8
    assert out0.shape == out1.shape and out0.ndim == 2
    B, D = out0.shape
    N = 2 * B

    # ---- Prologue (runs once in XLA): L2-normalize (matches torch F.normalize),
    # fold sqrt(1/t) into each side, cast to the compute dtype.
    sqrt_inv_t = math.sqrt(1.0 / float(temperature))
    z = jnp.concatenate([out0, out1], axis=0).astype(jnp.float32)
    norm = jnp.sqrt(jnp.sum(z * z, axis=1, keepdims=True))
    z_n = ((z / jnp.maximum(norm, 1e-12)) * jnp.float32(sqrt_inv_t)).astype(compute_dtype)

    # ---- Tile selection: MXU-aligned, <=128 rows (v5e spill budget), >=2 q blocks
    # (v7x megacore) whenever N allows it.
    tq = block_q if block_q is not None else _pick_block(N, min(128, max(N // 2, 8)))
    tk = block_k if block_k is not None else _pick_block(N, 256)
    assert N % tq == 0 and N % tk == 0, (N, tq, tk)
    grid = (N // tq, N // tk)

    # ---- Per-generation VMEM budget / key residency decision.
    itemsize = jnp.dtype(compute_dtype).itemsize
    vmem_cap = _vmem_capacity_bytes()
    slab_bytes = N * D * itemsize
    if keys_resident is None:
        keys_resident = (2 * slab_bytes) <= (vmem_cap // 4)
    keys_resident = bool(keys_resident)

    if keys_resident:
        # Constant index_map -> the normalized key slab is DMA'd from HBM once and
        # stays VMEM-resident; the kernel slices it per k block.
        k_spec = pl.BlockSpec((N, D), lambda i, j: (0, 0))
        k_bytes = slab_bytes
    else:
        k_spec = pl.BlockSpec((tk, D), lambda i, j: (j, 0))
        k_bytes = tk * D * itemsize

    # ---- Positive partners: reuse z with a rolled index_map (no extra HBM array)
    # when B is block_q-aligned; otherwise materialize the roll once.
    if B % tq == 0:
        nq_blocks = N // tq
        shift = B // tq
        part_arg = z_n
        part_spec = pl.BlockSpec((tq, D), lambda i, j: ((i + shift) % nq_blocks, 0))
    else:
        part_arg = jnp.concatenate([z_n[B:], z_n[:B]], axis=0)
        part_spec = pl.BlockSpec((tq, D), lambda i, j: (i, 0))

    # ---- Computed VMEM limit (+ headroom), capped at half physical VMEM.
    q_bytes = tq * D * itemsize
    out_bytes = tq * _OUT_LANES * 4
    scratch_bytes = 2 * tq * 128 * 4          # m/l accumulators (lane-padded est.)
    need = 2 * (q_bytes + k_bytes + q_bytes + out_bytes) + scratch_bytes
    vmem_limit = int(min(max(need + (8 << 20), 16 << 20), vmem_cap // 2))

    kernel = functools.partial(_ntxent_kernel, block_q=tq, block_k=tk,
                               keys_resident=keys_resident)

    per_row = pl.pallas_call(
        kernel,
        out_shape=jax.ShapeDtypeStruct((N, _OUT_LANES), jnp.float32),
        grid_spec=pltpu.PrefetchScalarGridSpec(
            num_scalar_prefetch=0,
            grid=grid,
            in_specs=[
                pl.BlockSpec((tq, D), lambda i, j: (i, 0)),   # query rows
                k_spec,                                       # keys (resident / streamed)
                part_spec,                                    # positive partners
            ],
            out_specs=pl.BlockSpec((tq, _OUT_LANES), lambda i, j: (i, 0)),
            scratch_shapes=[
                pltpu.VMEM((tq, 1), jnp.float32),   # running max  m
                pltpu.VMEM((tq, 1), jnp.float32),   # running sum  l
            ],
        ),
        compiler_params=pltpu.CompilerParams(
            dimension_semantics=("parallel", "arbitrary"),
            vmem_limit_bytes=vmem_limit,
        ),
    )(z_n, z_n, part_arg)

    return jnp.mean(per_row[:, 0])


def _reference_loss(out0, out1, temperature=0.5):
    """Pure-JAX reference mirroring the PyTorch NT-Xent code path."""
    def norm(x):
        n = jnp.sqrt(jnp.sum(x * x, axis=1, keepdims=True))
        return x / jnp.maximum(n, 1e-12)

    B = out0.shape[0]
    x0, x1 = norm(out0), norm(out1)
    t = temperature
    l00 = x0 @ x0.T / t
    l01 = x0 @ x1.T / t
    l10 = x1 @ x0.T / t
    l11 = x1 @ x1.T / t
    mask = ~jnp.eye(B, dtype=bool)
    l00 = l00[mask].reshape(B, B - 1)
    l11 = l11[mask].reshape(B, B - 1)
    logits = jnp.concatenate(
        [jnp.concatenate([l01, l00], axis=1),
         jnp.concatenate([l10, l11], axis=1)], axis=0)
    labels = jnp.tile(jnp.arange(B), 2)
    logp = jax.nn.log_softmax(logits, axis=1)
    return -jnp.mean(logp[jnp.arange(2 * B), labels])


if __name__ == "__main__":
    key = jax.random.PRNGKey(0)
    k0, k1, k2, k3, k4, k5 = jax.random.split(key, 6)

    # 1) Small shapes (projection-head sized): batch=8, embed=32.  Auto config:
    #    tq=8 (two q blocks), resident keys, rolled-partner index_map.
    B, D = 8, 32
    out0 = jax.random.normal(k0, (B, D), dtype=jnp.float32)
    out1 = jax.random.normal(k1, (B, D), dtype=jnp.float32)
    ref = _reference_loss(out0, out1, temperature=0.5)

    loss_f32 = jax.block_until_ready(
        ntxent_loss(out0, out1, 0.5, compute_dtype=jnp.float32))
    assert jnp.allclose(loss_f32, ref, rtol=1e-5, atol=5e-5), (loss_f32, ref)

    loss_bf16 = jax.block_until_ready(ntxent_loss(out0, out1, 0.5))
    assert jnp.allclose(loss_bf16, ref, rtol=2e-2, atol=3e-2), (loss_bf16, ref)

    # 2) Multi-tile: B=64, D=32 — exercises online LSE across k blocks, the
    #    pl.when diagonal-mask guard, resident vs streamed keys, and bf16 defaults.
    B2, D2 = 64, 32
    a0 = jax.random.normal(k2, (B2, D2), dtype=jnp.float32)
    a1 = jax.random.normal(k3, (B2, D2), dtype=jnp.float32)
    ref2 = _reference_loss(a0, a1, temperature=0.2)

    loss2a = jax.block_until_ready(
        ntxent_loss(a0, a1, 0.2, compute_dtype=jnp.float32,
                    block_q=32, block_k=32, keys_resident=True))
    assert jnp.allclose(loss2a, ref2, rtol=1e-5, atol=1e-4), (loss2a, ref2)

    loss2b = jax.block_until_ready(
        ntxent_loss(a0, a1, 0.2, compute_dtype=jnp.float32,
                    block_q=32, block_k=64, keys_resident=False))
    assert jnp.allclose(loss2b, ref2, rtol=1e-5, atol=1e-4), (loss2b, ref2)

    loss2c = jax.block_until_ready(ntxent_loss(a0, a1, 0.2))   # bf16 production path
    assert jnp.allclose(loss2c, ref2, rtol=2e-2, atol=8e-2), (loss2c, ref2)

    # 3) B not divisible by block_q -> materialized-partner fallback path.
    B3, D3 = 12, 32
    b0 = jax.random.normal(k4, (B3, D3), dtype=jnp.float32)
    b1 = jax.random.normal(k5, (B3, D3), dtype=jnp.float32)
    ref3 = _reference_loss(b0, b1, temperature=0.5)
    loss3 = jax.block_until_ready(
        ntxent_loss(b0, b1, 0.5, compute_dtype=jnp.float32))
    assert jnp.allclose(loss3, ref3, rtol=1e-5, atol=1e-4), (loss3, ref3)

    print("KERNEL_OK")
</pallas_src>

<mosaic_0001>
module attributes {stable_mosaic.version = 11 : i64} {
  func.func @_ntxent_kernel(%arg0: i32, %arg1: i32, %arg2: memref<8x32xf32, #tpu.memory_space<vmem>>, %arg3: memref<16x32xf32, #tpu.memory_space<vmem>>, %arg4: memref<8x32xf32, #tpu.memory_space<vmem>>, %arg5: memref<8x128xf32, #tpu.memory_space<vmem>>, %arg6: memref<8x1xf32, #tpu.memory_space<vmem>>, %arg7: memref<8x1xf32, #tpu.memory_space<vmem>>) attributes {dimension_semantics = [#tpu.dimension_semantics<parallel>, #tpu.dimension_semantics<arbitrary>], iteration_bounds = array<i64: 2, 1>, scalar_prefetch = 0 : i64, scratch_operands = 2 : i64, tpu.core_type = #tpu.core_type<tc>, window_params = [{transform_indices = @transform_0, window_bounds = array<i64: 8, 32>}, {pipeline_mode = #tpu.pipeline_mode<synchronous>, transform_indices = @transform_1, window_bounds = array<i64: 16, 32>}, {transform_indices = @transform_2, window_bounds = array<i64: 8, 32>}, {transform_indices = @transform_3, window_bounds = array<i64: 8, 128>}]} {
    %c0_i32 = arith.constant 0 : i32
    %0 = arith.cmpi eq, %arg1, %c0_i32 : i32
    %1 = arith.extui %0 : i1 to i32
    %c0_i32_0 = arith.constant 0 : i32
    %2 = arith.cmpi ne, %1, %c0_i32_0 : i32
    scf.if %2 {
      %cst_10 = arith.constant -1.000000e+30 : f32
      %24 = vector.broadcast %cst_10 : f32 to vector<8x1xf32>
      %c0_11 = arith.constant 0 : index
      %c0_12 = arith.constant 0 : index
      %25 = vector.load %arg6[%c0_11, %c0_12] : memref<8x1xf32, #tpu.memory_space<vmem>>, vector<8x1xf32>
      tpu.vector_store %arg6[%c0_11, %c0_12], %24 {strides = array<i32>} : memref<8x1xf32, #tpu.memory_space<vmem>>, vector<8x1xf32>,
      %cst_13 = arith.constant 0.000000e+00 : f32
      %26 = vector.broadcast %cst_13 : f32 to vector<8x1xf32>
      %c0_14 = arith.constant 0 : index
      %c0_15 = arith.constant 0 : index
      %27 = vector.load %arg7[%c0_14, %c0_15] : memref<8x1xf32, #tpu.memory_space<vmem>>, vector<8x1xf32>
      tpu.vector_store %arg7[%c0_14, %c0_15], %26 {strides = array<i32>} : memref<8x1xf32, #tpu.memory_space<vmem>>, vector<8x1xf32>,
    } else {
    }
    %c0 = arith.constant 0 : index
    %c0_1 = arith.constant 0 : index
    %3 = vector.load %arg2[%c0, %c0_1] : memref<8x32xf32, #tpu.memory_space<vmem>>, vector<8x32xf32>
    %c16_i32 = arith.constant 16 : i32
    %4 = arith.muli %arg1, %c16_i32 : i32
    %5 = tpu.assume_multiple %4, 16 : i32
    %6 = arith.index_cast %5 : i32 to index
    %c0_2 = arith.constant 0 : index
    %7 = vector.load %arg3[%6, %c0_2] : memref<16x32xf32, #tpu.memory_space<vmem>>, vector<16x32xf32>
    %cst = arith.constant dense<0.000000e+00> : vector<8x16xf32>
    %8 = tpu.matmul %3, %7, %cst {dimension_numbers = #tpu.dot_dimension_numbers<[1], [1], [0], [0], [0, 0, 1, 0], [], []>} : vector<8x32xf32>, vector<16x32xf32>, vector<8x16xf32> -> vector<8x16xf32>
    %c8_i32 = arith.constant 8 : i32
    %9 = arith.muli %arg0, %c8_i32 : i32
    %c16_i32_3 = arith.constant 16 : i32
    %10 = arith.muli %arg1, %c16_i32_3 : i32
    %c16_i32_4 = arith.constant 16 : i32
    %11 = arith.addi %10, %c16_i32_4 : i32
    %12 = arith.cmpi slt, %9, %11 : i32
    %c8_i32_5 = arith.constant 8 : i32
    %13 = arith.addi %9, %c8_i32_5 : i32
    %14 = arith.cmpi slt, %10, %13 : i32
    %15 = arith.andi %12, %14 : i1
    %16 = arith.extui %15 : i1 to i32
    %c0_i32_6 = arith.constant 0 : i32
    %17 = arith.cmpi ne, %16, %c0_i32_6 : i32
    scf.if %17 {
      %24 = tpu.iota {dimensions = array<i32: 0>} : vector<8x16xi32>
      %25 = vector.broadcast %9 : i32 to vector<8x16xi32>
      %26 = arith.addi %25, %24 : vector<8x16xi32>
      %27 = tpu.iota {dimensions = array<i32: 1>} : vector<8x16xi32>
      %28 = vector.broadcast %10 : i32 to vector<8x16xi32>
      %29 = arith.addi %28, %27 : vector<8x16xi32>
      %30 = arith.cmpi eq, %26, %29 : vector<8x16xi32>
      %cst_10 = arith.constant -1.000000e+30 : f32
      %31 = vector.broadcast %cst_10 : f32 to vector<8x16xf32>
      %32 = arith.select %30, %31, %8 : vector<8x16xi1>, vector<8x16xf32>
      %c0_11 = arith.constant 0 : index
      %c0_12 = arith.constant 0 : index
      %33 = vector.load %arg6[%c0_11, %c0_12] : memref<8x1xf32, #tpu.memory_space<vmem>>, vector<8x1xf32>
      %cst_13 = arith.constant dense<0xFF800000> : vector<8xf32>
      %34 = vector.multi_reduction <maximumf>, %32, %cst_13 [1] : vector<8x16xf32> to vector<8xf32>
      %35 = vector.shape_cast %34 : vector<8xf32> to vector<8x1xf32>
      %36 = arith.maximumf %33, %35 : vector<8x1xf32>
      %c0_14 = arith.constant 0 : index
      %c0_15 = arith.constant 0 : index
      %37 = vector.load %arg7[%c0_14, %c0_15] : memref<8x1xf32, #tpu.memory_space<vmem>>, vector<8x1xf32>
      %38 = arith.subf %33, %36 : vector<8x1xf32>
      %39 = math.exp %38 : vector<8x1xf32>
      %40 = arith.mulf %37, %39 : vector<8x1xf32>
      %41 = vector.broadcast %36 : vector<8x1xf32> to vector<8x16xf32>
      %42 = arith.subf %32, %41 : vector<8x16xf32>
      %43 = math.exp %42 : vector<8x16xf32>
      %cst_16 = arith.constant dense<0.000000e+00> : vector<8xf32>
      %44 = vector.multi_reduction <add>, %43, %cst_16 [1] : vector<8x16xf32> to vector<8xf32>
      %45 = vector.shape_cast %44 : vector<8xf32> to vector<8x1xf32>
      %46 = arith.addf %40, %45 : vector<8x1xf32>
      %c0_17 = arith.constant 0 : index
      %c0_18 = arith.constant 0 : index
      %47 = vector.load %arg7[%c0_17, %c0_18] : memref<8x1xf32, #tpu.memory_space<vmem>>, vector<8x1xf32>
      tpu.vector_store %arg7[%c0_17, %c0_18], %46 {strides = array<i32>} : memref<8x1xf32, #tpu.memory_space<vmem>>, vector<8x1xf32>,
      %c0_19 = arith.constant 0 : index
      %c0_20 = arith.constant 0 : index
      %48 = vector.load %arg6[%c0_19, %c0_20] : memref<8x1xf32, #tpu.memory_space<vmem>>, vector<8x1xf32>
      tpu.vector_store %arg6[%c0_19, %c0_20], %36 {strides = array<i32>} : memref<8x1xf32, #tpu.memory_space<vmem>>, vector<8x1xf32>,
    } else {
    }
    %true = arith.constant true
    %18 = arith.xori %15, %true : i1
    %19 = arith.extui %18 : i1 to i32
    %c0_i32_7 = arith.constant 0 : i32
    %20 = arith.cmpi ne, %19, %c0_i32_7 : i32
    scf.if %20 {
      %c0_10 = arith.constant 0 : index
      %c0_11 = arith.constant 0 : index
      %24 = vector.load %arg6[%c0_10, %c0_11] : memref<8x1xf32, #tpu.memory_space<vmem>>, vector<8x1xf32>
      %cst_12 = arith.constant dense<0xFF800000> : vector<8xf32>
      %25 = vector.multi_reduction <maximumf>, %8, %cst_12 [1] : vector<8x16xf32> to vector<8xf32>
      %26 = vector.shape_cast %25 : vector<8xf32> to vector<8x1xf32>
      %27 = arith.maximumf %24, %26 : vector<8x1xf32>
      %c0_13 = arith.constant 0 : index
      %c0_14 = arith.constant 0 : index
      %28 = vector.load %arg7[%c0_13, %c0_14] : memref<8x1xf32, #tpu.memory_space<vmem>>, vector<8x1xf32>
      %29 = arith.subf %24, %27 : vector<8x1xf32>
      %30 = math.exp %29 : vector<8x1xf32>
      %31 = arith.mulf %28, %30 : vector<8x1xf32>
      %32 = vector.broadcast %27 : vector<8x1xf32> to vector<8x16xf32>
      %33 = arith.subf %8, %32 : vector<8x16xf32>
      %34 = math.exp %33 : vector<8x16xf32>
      %cst_15 = arith.constant dense<0.000000e+00> : vector<8xf32>
      %35 = vector.multi_reduction <add>, %34, %cst_15 [1] : vector<8x16xf32> to vector<8xf32>
      %36 = vector.shape_cast %35 : vector<8xf32> to vector<8x1xf32>
      %37 = arith.addf %31, %36 : vector<8x1xf32>
      %c0_16 = arith.constant 0 : index
      %c0_17 = arith.constant 0 : index
      %38 = vector.load %arg7[%c0_16, %c0_17] : memref<8x1xf32, #tpu.memory_space<vmem>>, vector<8x1xf32>
      tpu.vector_store %arg7[%c0_16, %c0_17], %37 {strides = array<i32>} : memref<8x1xf32, #tpu.memory_space<vmem>>, vector<8x1xf32>,
      %c0_18 = arith.constant 0 : index
      %c0_19 = arith.constant 0 : index
      %39 = vector.load %arg6[%c0_18, %c0_19] : memref<8x1xf32, #tpu.memory_space<vmem>>, vector<8x1xf32>
      tpu.vector_store %arg6[%c0_18, %c0_19], %27 {strides = array<i32>} : memref<8x1xf32, #tpu.memory_space<vmem>>, vector<8x1xf32>,
    } else {
    }
    %c0_i32_8 = arith.constant 0 : i32
    %21 = arith.cmpi eq, %arg1, %c0_i32_8 : i32
    %22 = arith.extui %21 : i1 to i32
    %c0_i32_9 = arith.constant 0 : i32
    %23 = arith.cmpi ne, %22, %c0_i32_9 : i32
    scf.if %23 {
      %c0_10 = arith.constant 0 : index
      %c0_11 = arith.constant 0 : index
      %24 = vector.load %arg4[%c0_10, %c0_11] : memref<8x32xf32, #tpu.memory_space<vmem>>, vector<8x32xf32>
      %25 = arith.mulf %3, %24 : vector<8x32xf32>
      %cst_12 = arith.constant dense<0.000000e+00> : vector<8xf32>
      %26 = vector.multi_reduction <add>, %25, %cst_12 [1] : vector<8x32xf32> to vector<8xf32>
      %27 = vector.shape_cast %26 : vector<8xf32> to vector<8x1xf32>
      %c0_13 = arith.constant 0 : index
      %c0_14 = arith.constant 0 : index
      %28 = vector.load %arg6[%c0_13, %c0_14] : memref<8x1xf32, #tpu.memory_space<vmem>>, vector<8x1xf32>
      %c0_15 = arith.constant 0 : index
      %c0_16 = arith.constant 0 : index
      %29 = vector.load %arg7[%c0_15, %c0_16] : memref<8x1xf32, #tpu.memory_space<vmem>>, vector<8x1xf32>
      %30 = math.log %29 : vector<8x1xf32>
      %31 = arith.addf %28, %30 : vector<8x1xf32>
      %32 = arith.subf %31, %27 : vector<8x1xf32>
      %33 = vector.shape_cast %32 : vector<8x1xf32> to vector<8x1xf32>
      %34 = vector.broadcast %33 : vector<8x1xf32> to vector<8x128xf32>
      %c0_17 = arith.constant 0 : index
      %c0_18 = arith.constant 0 : index
      %35 = vector.load %arg5[%c0_17, %c0_18] : memref<8x128xf32, #tpu.memory_space<vmem>>, vector<8x128xf32>
      tpu.vector_store %arg5[%c0_17, %c0_18], %34 {strides = array<i32>} : memref<8x128xf32, #tpu.memory_space<vmem>>, vector<8x128xf32>,
    } else {
    }
    return
  }
  func.func @transform_0(%arg0: i32, %arg1: i32) -> (i32, i32) {
    %c0_i32 = arith.constant 0 : i32
    %c0_i32_0 = arith.constant 0 : i32
    return %arg0, %c0_i32 : i32, i32
  }
  func.func @transform_1(%arg0: i32, %arg1: i32) -> (i32, i32) {
    %c0_i32 = arith.constant 0 : i32
    %c0_i32_0 = arith.constant 0 : i32
    %c0_i32_1 = arith.constant 0 : i32
    return %c0_i32, %c0_i32_0 : i32, i32
  }
  func.func @transform_2(%arg0: i32, %arg1: i32) -> (i32, i32) {
    %c1_i32 = arith.constant 1 : i32
    %0 = arith.addi %arg0, %c1_i32 : i32
    %c2_i32 = arith.constant 2 : i32
    %c0_i32 = arith.constant 0 : i32
    %1 = arith.cmpi eq, %c2_i32, %c0_i32 : i32
    %c1_i32_0 = arith.constant 1 : i32
    %2 = arith.select %1, %c1_i32_0, %c2_i32 : i32
    %3 = arith.remsi %0, %2 : i32
    %c0_i32_1 = arith.constant 0 : i32
    %4 = arith.cmpi ne, %3, %c0_i32_1 : i32
    %c0_i32_2 = arith.constant 0 : i32
    %5 = arith.cmpi slt, %3, %c0_i32_2 : i32
    %c0_i32_3 = arith.constant 0 : i32
    %6 = arith.cmpi slt, %2, %c0_i32_3 : i32
    %7 = arith.xori %5, %6 : i1
    %8 = arith.andi %7, %4 : i1
    %9 = arith.addi %3, %2 : i32
    %10 = arith.select %8, %9, %3 : i32
    %c0_i32_4 = arith.constant 0 : i32
    %c0_i32_5 = arith.constant 0 : i32
    return %10, %c0_i32_4 : i32, i32
  }
  func.func @transform_3(%arg0: i32, %arg1: i32) -> (i32, i32) {
    %c0_i32 = arith.constant 0 : i32
    %c0_i32_0 = arith.constant 0 : i32
    return %arg0, %c0_i32 : i32, i32
  }
}

</mosaic_0001>

<llo_original>
// kernel: tpu_custom_call.1
$region0: #{tpu_custom_call.1}
  #allocation0 [shape = 'u32[]', space=smem, size = 0x4, offset = 0x4, fixed_abs, tag = 'smem constant byte address 0x4 - core index']
  #allocation1 [shape = 'u32[144,128]{1,0:T(1,128)}', space=vmem, size = 0x12000, scoped, tag = 'internal scratch']
  #allocation2 [shape = 'f32[8,1]{1,0:T(8,128)}', space=vmem, size = 0x1000, scoped, tag = 'scratch operand']
  #allocation3 [shape = 'f32[8,1]{1,0:T(8,128)}', space=vmem, size = 0x1000, scoped, tag = 'scratch operand']
  %s0 = inlined_call_operand.hbm [shape: f32[16,32], index: 0, kind: input, shape index: {}]
  %s1 = inlined_call_operand.hbm [shape: f32[16,32], index: 1, kind: input, shape index: {}]
  %s2 = inlined_call_operand.hbm [shape: f32[16,32], index: 2, kind: input, shape index: {}]
  %s3 = inlined_call_operand.hbm [shape: f32[16,128], index: 3, kind: output, shape index: {}]
  %s4 = sld [smem:[#allocation0]]
  $region73: #{tpu_custom_call.1} parent=0
    _
  %s6 = ssub.s32 1, %s4
  %s7 = scalar_select 0, %s6, %s4
  $region1: #{tpu_custom_call.1} parent=0
    #allocation4 [shape = 'u8[8192]{0}', space=vmem, size = 0x2000, scoped, tag = 'input window, operand 0']
    #allocation5 [shape = 's32[2]{0}', space=sflag, size = 0x8, scoped, tag = 'scoped memory for tpu_custom_call.1']
    #allocation6 [shape = 's32[2]{0}', space=sflag, size = 0x8, scoped, tag = 'scoped memory for tpu_custom_call.1']
    #allocation7 [shape = 'u8[8192]{0}', space=vmem, size = 0x2000, scoped, tag = 'input window, operand 1, single buffered']
    #allocation8 [shape = 's32[1]{0}', space=sflag, size = 0x4, scoped, tag = 'scoped memory for tpu_custom_call.1']
    #allocation9 [shape = 'u8[8192]{0}', space=vmem, size = 0x2000, scoped, tag = 'input window, operand 2']
    #allocation10 [shape = 'u8[8192]{0}', space=vmem, size = 0x2000, scoped, tag = 'output window, operand 0']
    %8 = vsyncpa [#allocation5], 0
    %s9 = scalar_lea.sflag [#allocation5], 1
    %10 = vsyncpa %s9, 0
    %11 = vsyncpa [#allocation8], 0
    %12 = vsyncpa [#allocation6], 0
    %s13 = scalar_lea.sflag [#allocation6], 1
    %14 = vsyncpa %s13, 0
    loop: start=0, step=1, limit=4
    $region2: #{tpu_custom_call.1} parent=1 // loop_pre_header
      _
    $region3: #{tpu_custom_call.1} parent=1 // loop_header
      %s16 = sphi 0, %s20
      %p17 = scmp.ge.s32.totalorder %s16, 4
      %s23 = sphi 0, %s35
      %s24 = sphi 0, %s31
      %s25 = sphi 0, %s23
      %s26 = sphi 0, %s24
      %s27 = sphi 0, %s25
      %s28 = sphi 0, %s26
      %s38 = sphi 0, %s40
      %s41 = sphi 0, %s38
      %s42 = sphi 0, %s41
      %s58 = sphi 0, %s42
      %s62 = sphi 0, %s62
      %s64 = sphi 0, %s62
      %s65 = sphi 0, %s64
      %s79 = sphi 0, %s65
      %s111 = sphi 0, %s113
      %s114 = sphi 0, %s111
      %s115 = sphi 0, %s114
      %s131 = sphi 0, %s115
      %s137 = sphi 0, %s139
      %s140 = sphi 0, %s137
      %s141 = sphi 0, %s140
      %s157 = sphi 0, %s141
    $region4: #{tpu_custom_call.1} parent=1 // loop_header_branch
      %19 = sbr.rel (%p17) target = $region8
    $region5: #{tpu_custom_call.1} parent=1 // loop_body
      %s21 = ssub.s32 %s16, 1
      %s22 = ssub.s32 %s16, 2
      %s29 = sadd.s32 1, %s24
      %p30 = scmp.ge.s32.totalorder %s29, 1
      %s31 = scalar_select %p30, 0, %s29
      %s32 = sadd.s32 1, %s23
      %s33 = scalar_select %p30, %s32, %s23
      %p34 = scmp.ge.s32.totalorder %s33, 2
      %s35 = scalar_select %p34, 0, %s33
      %s36 = ssub.s32 %s23, %s35
      %p37 = scmp.eq.s32.totalorder %s36, 0
      %s39 = sadd.s32 %s38, 1
      %s40 = scalar_select %p37, %s38, %s39
      %p43 = pneg %p37
      %p44 = scmp.eq.s32.totalorder %s16, 1
      %p45 = por %p43, %p44
      %p46 = scmp.ne.s32.totalorder %s38, %s41
      %p47 = scmp.eq.s32.totalorder %s16, 0
      %p48 = por %p46, %p47
      %p49 = scmp.ne.s32.totalorder %s38, %s41
      %p50 = scmp.eq.s32.totalorder %s21, 1
      %p51 = por %p49, %p50
      %p52 = scmp.ne.s32.totalorder %s41, %s42
      %p53 = scmp.eq.s32.totalorder %s21, 0
      %p54 = por %p52, %p53
      %p55 = scmp.ne.s32.totalorder %s41, %s42
      %p56 = scmp.eq.s32.totalorder %s22, 1
      %p57 = por %p55, %p56
      %p59 = scmp.ne.s32.totalorder %s42, %s58
      %p60 = scmp.eq.s32.totalorder %s22, 0
      %p61 = por %p59, %p60
      %s63 = sadd.s32 %s62, 1
      %p66 = scmp.eq.s32.totalorder %s16, 1
      %p67 = scmp.ne.s32.totalorder %s62, %s64
      %p68 = scmp.eq.s32.totalorder %s16, 0
      %p69 = por %p67, %p68
      %p70 = scmp.ne.s32.totalorder %s62, %s64
      %p71 = scmp.eq.s32.totalorder %s21, 1
      %p72 = por %p70, %p71
      %p73 = scmp.ne.s32.totalorder %s64, %s65
      %p74 = scmp.eq.s32.totalorder %s21, 0
      %p75 = por %p73, %p74
      %p76 = scmp.ne.s32.totalorder %s64, %s65
      %p77 = scmp.eq.s32.totalorder %s22, 1
      %p78 = por %p76, %p77
      %p80 = scmp.ne.s32.totalorder %s65, %s79
      %p81 = scmp.eq.s32.totalorder %s22, 0
      %p82 = por %p80, %p81
      %s83 = sadd.s32 %s23, 1
      %p84 = scmp.lt.s32.totalorder %s83, 0
      %s85 = ssub.s32 0, %s83
      %s86 = scalar_select %p84, %s85, %s83
      %s87 = sand.u32 %s86, 1
      %s88 = ssub.s32 0, %s87
      %s89 = scalar_select %p84, %s88, %s87
      %p90 = scmp.ne.s32.totalorder %s89, 0
      %p91 = scmp.lt.s32.totalorder %s89, 0
      %p92 = pnand %p91, %p90
      %p93 = pneg %p92
      %s94 = sadd.s32 %s89, 2
      %s95 = scalar_select %p93, %s94, %s89
      %s96 = sadd.s32 %s35, 1
      %p97 = scmp.lt.s32.totalorder %s96, 0
      %s98 = ssub.s32 0, %s96
      %s99 = scalar_select %p97, %s98, %s96
      %s100 = sand.u32 %s99, 1
      %s101 = ssub.s32 0, %s100
      %s102 = scalar_select %p97, %s101, %s100
      %p103 = scmp.ne.s32.totalorder %s102, 0
      %p104 = scmp.lt.s32.totalorder %s102, 0
      %p105 = pnand %p104, %p103
      %p106 = pneg %p105
      %s107 = sadd.s32 %s102, 2
      %s108 = scalar_select %p106, %s107, %s102
      %s109 = ssub.s32 %s95, %s108
      %p110 = scmp.eq.s32.totalorder %s109, 0
      %s112 = sadd.s32 %s111, 1
      %s113 = scalar_select %p110, %s111, %s112
      %p116 = pneg %p110
      %p117 = scmp.eq.s32.totalorder %s16, 1
      %p118 = por %p116, %p117
      %p119 = scmp.ne.s32.totalorder %s111, %s114
      %p120 = scmp.eq.s32.totalorder %s16, 0
      %p121 = por %p119, %p120
      %p122 = scmp.ne.s32.totalorder %s111, %s114
      %p123 = scmp.eq.s32.totalorder %s21, 1
      %p124 = por %p122, %p123
      %p125 = scmp.ne.s32.totalorder %s114, %s115
      %p126 = scmp.eq.s32.totalorder %s21, 0
      %p127 = por %p125, %p126
      %p128 = scmp.ne.s32.totalorder %s114, %s115
      %p129 = scmp.eq.s32.totalorder %s22, 1
      %p130 = por %p128, %p129
      %p132 = scmp.ne.s32.totalorder %s115, %s131
      %p133 = scmp.eq.s32.totalorder %s22, 0
      %p134 = por %p132, %p133
      %s135 = ssub.s32 %s23, %s35
      %p136 = scmp.eq.s32.totalorder %s135, 0
      %s138 = sadd.s32 %s137, 1
      %s139 = scalar_select %p136, %s137, %s138
      %p142 = pneg %p136
      %p143 = scmp.eq.s32.totalorder %s16, 1
      %p144 = por %p142, %p143
      %p145 = scmp.ne.s32.totalorder %s137, %s140
      %p146 = scmp.eq.s32.totalorder %s16, 0
      %p147 = por %p145, %p146
      %p148 = scmp.ne.s32.totalorder %s137, %s140
      %p149 = scmp.eq.s32.totalorder %s21, 1
      %p150 = por %p148, %p149
      %p151 = scmp.ne.s32.totalorder %s140, %s141
      %p152 = scmp.eq.s32.totalorder %s21, 0
      %p153 = por %p151, %p152
      %p154 = scmp.ne.s32.totalorder %s140, %s141
      %p155 = scmp.eq.s32.totalorder %s22, 1
      %p156 = por %p154, %p155
      %p158 = scmp.ne.s32.totalorder %s141, %s157
      %p159 = scmp.eq.s32.totalorder %s22, 0
      %p160 = por %p158, %p159
      %p161 = scmp.le.s32.totalorder 1, %s16
      %p162 = scmp.lt.s32.totalorder %s16, 3
      %p163 = pnand %p161, %p162
      %p164 = pneg %p163
      // Predicated region
      $region9: #{tpu_custom_call.1} parent=5 // pred_check
        _
      $region10: #{tpu_custom_call.1} parent=5 // pred_check_branch
        %166 = sbr.rel (%p163) target = $region12
      $region11: #{tpu_custom_call.1} parent=5 // pred_region
        %s167 = ssub.s32 %s16, 1
        // Predicated region
        $region13: #{tpu_custom_call.1} parent=11 // pred_check
          %p168 = pneg %p75
        $region14: #{tpu_custom_call.1} parent=11 // pred_check_branch
          %170 = sbr.rel (%p168) target = $region16
        $region15: #{tpu_custom_call.1} parent=11 // pred_region
          %s172 = ssub.s32 256, 256
          %173 = vsyncadd [#allocation8], %s172
          %s174 = sshll.u32 [#allocation7], 4
          %s175 = int_to_ptr.vmem [resolvable:$true] %s174
          %180 = dma.hbm_to_vmem [thread:$0]  %s1, 256, %s175, [#allocation8], 128, 128, 8
        $region16: #{tpu_custom_call.1} parent=11 // pred_fallthru
          _
      $region12: #{tpu_custom_call.1} parent=5 // pred_fallthru
        _
      %p181 = scmp.lt.s32.totalorder %s16, 2
      // Predicated region
      $region17: #{tpu_custom_call.1} parent=5 // pred_check
        %p182 = pneg %p181
      $region18: #{tpu_custom_call.1} parent=5 // pred_check_branch
        %184 = sbr.rel (%p182) target = $region20
      $region19: #{tpu_custom_call.1} parent=5 // pred_region
        // Predicated region
        $region21: #{tpu_custom_call.1} parent=19 // pred_check
          %p185 = pneg %p48
        $region22: #{tpu_custom_call.1} parent=19 // pred_check_branch
          %187 = sbr.rel (%p185) target = $region24
        $region23: #{tpu_custom_call.1} parent=19 // pred_region
          %s188 = sand.u32 %s16, 1
          %s189 = scalar_lea.sflag [#allocation5], %s188
          %s190 = sand.u32 %s38, 1
          %s191 = smul.addr %s190, 8
          %s192 = scalar_lea.vmem [#allocation4], %s191
          %s194 = ssub.s32 128, 128
          %195 = vsyncadd %s189, %s194
          %s196 = smul.addr %s23, 128
          %s197 = scalar_lea.hbm %s0, %s196
          %s199 = sshll.u32 %s192, 4
          %s200 = int_to_ptr.vmem [resolvable:$true] %s199
          %202 = dma.hbm_to_vmem [thread:$0]  %s197, 128, %s200, %s189
        $region24: #{tpu_custom_call.1} parent=19 // pred_fallthru
          _
        // Predicated region
        $region25: #{tpu_custom_call.1} parent=19 // pred_check
          %p203 = pneg %p121
        $region26: #{tpu_custom_call.1} parent=19 // pred_check_branch
          %205 = sbr.rel (%p203) target = $region28
        $region27: #{tpu_custom_call.1} parent=19 // pred_region
          %s206 = sand.u32 %s16, 1
          %s207 = scalar_lea.sflag [#allocation5], %s206
          %s208 = sand.u32 %s111, 1
          %s209 = smul.addr %s208, 8
          %s210 = scalar_lea.vmem [#allocation9], %s209
          %s211 = sadd.s32 %s23, 1
          %p212 = scmp.lt.s32.totalorder %s211, 0
          %s213 = ssub.s32 0, %s211
          %s214 = scalar_select %p212, %s213, %s211
          %s215 = sand.u32 %s214, 1
          %s216 = ssub.s32 0, %s215
          %s217 = scalar_select %p212, %s216, %s215
          %p218 = scmp.ne.s32.totalorder %s217, 0
          %p219 = scmp.lt.s32.totalorder %s217, 0
          %p220 = pnand %p219, %p218
          %p221 = pneg %p220
          %s222 = sadd.s32 %s217, 2
          %s223 = scalar_select %p221, %s222, %s217
          %s225 = ssub.s32 128, 128
          %226 = vsyncadd %s207, %s225
          %s227 = smul.addr %s223, 128
          %s228 = scalar_lea.hbm %s2, %s227
          %s230 = sshll.u32 %s210, 4
          %s231 = int_to_ptr.vmem [resolvable:$true] %s230
          %233 = dma.hbm_to_vmem [thread:$0]  %s228, 128, %s231, %s207
        $region28: #{tpu_custom_call.1} parent=19 // pred_fallthru
          _
      $region20: #{tpu_custom_call.1} parent=5 // pred_fallthru
        _
      %p234 = scmp.le.s32.totalorder 1, %s16
      %p235 = scmp.lt.s32.totalorder %s16, 3
      %p236 = pnand %p234, %p235
      %p237 = pneg %p236
      // Predicated region
      $region29: #{tpu_custom_call.1} parent=5 // pred_check
        _
      $region30: #{tpu_custom_call.1} parent=5 // pred_check_branch
        %239 = sbr.rel (%p236) target = $region32
      $region31: #{tpu_custom_call.1} parent=5 // pred_region
        %s240 = ssub.s32 %s16, 1
        %s241 = sand.u32 %s21, 1
        %s242 = scalar_lea.sflag [#allocation5], %s241
        %s243 = sand.u32 %s41, 1
        %s244 = smul.addr %s243, 8
        %s245 = scalar_lea.vmem [#allocation4], %s244
        // Predicated region
        $region33: #{tpu_custom_call.1} parent=31 // pred_check
          %p246 = pneg %p54
        $region34: #{tpu_custom_call.1} parent=31 // pred_check_branch
          %248 = sbr.rel (%p246) target = $region36
        $region35: #{tpu_custom_call.1} parent=31 // pred_region
          %249 = dma.done %s242, 128
        $region36: #{tpu_custom_call.1} parent=31 // pred_fallthru
          _
        // Predicated region
        $region37: #{tpu_custom_call.1} parent=31 // pred_check
          %p250 = pneg %p75
        $region38: #{tpu_custom_call.1} parent=31 // pred_check_branch
          %252 = sbr.rel (%p250) target = $region40
        $region39: #{tpu_custom_call.1} parent=31 // pred_region
          %253 = dma.done [#allocation8], 256
        $region40: #{tpu_custom_call.1} parent=31 // pred_fallthru
          _
        %s254 = sand.u32 %s21, 1
        %s255 = scalar_lea.sflag [#allocation5], %s254
        %s256 = sand.u32 %s114, 1
        %s257 = smul.addr %s256, 8
        %s258 = scalar_lea.vmem [#allocation9], %s257
        // Predicated region
        $region41: #{tpu_custom_call.1} parent=31 // pred_check
          %p259 = pneg %p127
        $region42: #{tpu_custom_call.1} parent=31 // pred_check_branch
          %261 = sbr.rel (%p259) target = $region44
        $region43: #{tpu_custom_call.1} parent=31 // pred_region
          %262 = dma.done %s255, 128
        $region44: #{tpu_custom_call.1} parent=31 // pred_fallthru
          _
        %s263 = sand.u32 %s21, 1
        %s264 = scalar_lea.sflag [#allocation5], %s263
        %s265 = sand.u32 %s41, 1
        %s266 = smul.addr %s265, 8
        %s267 = scalar_lea.vmem [#allocation4], %s266
        %p268 = pneg %p54
        %p269 = pneg %p51
        %p270 = pneg %p75
        %p271 = pneg %p72
        %s272 = sand.u32 %s21, 1
        %s273 = scalar_lea.sflag [#allocation5], %s272
        %s274 = sand.u32 %s114, 1
        %s275 = smul.addr %s274, 8
        %s276 = scalar_lea.vmem [#allocation9], %s275
        %p277 = pneg %p127
        %p278 = pneg %p124
        %p279 = pneg %p153
        %p280 = pneg %p150
        %s281 = sand.u32 %s140, 1
        %s282 = scalar_lea.sflag [#allocation6], %s281
        %s283 = sand.u32 %s140, 1
        %s284 = smul.addr %s283, 8
        %s285 = scalar_lea.vmem [#allocation10], %s284
        %s286 = sadd.s32 %s25, 1
        %p287 = scmp.lt.s32.totalorder %s286, 0
        %s288 = ssub.s32 0, %s286
        %s289 = scalar_select %p287, %s288, %s286
        %s290 = sand.u32 %s289, 1
        %s291 = ssub.s32 0, %s290
        %s292 = scalar_select %p287, %s291, %s290
        %p293 = scmp.ne.s32.totalorder %s292, 0
        %p294 = scmp.lt.s32.totalorder %s292, 0
        %p295 = pnand %p294, %p293
        %p296 = pneg %p295
        %s297 = sadd.s32 %s292, 2
        %s298 = scalar_select %p296, %s297, %s292
        %p299 = scmp.eq.s32.totalorder %s26, 0
        // Predicated region
        $region45: #{tpu_custom_call.1} parent=31 // pred_check
          %p300 = pneg %p299
        $region46: #{tpu_custom_call.1} parent=31 // pred_check_branch
          %302 = sbr.rel (%p300) target = $region48
        $region47: #{tpu_custom_call.1} parent=31 // pred_region
          %vm303 = vcmask 7168
          %304 = vst.msk [vmem:[#allocation2] sm:$0xff] %vm303, -1e+30
          %305 = vst.msk [vmem:[#allocation3] sm:$0xff] %vm303, 0.0
        $region48: #{tpu_custom_call.1} parent=31 // pred_fallthru
          _
        %v306 = vld [vmem:[%s245] sm:$0xff]
        %s307 = smul.u32 %s26, 16
        %s308 = scalar_lea.vmem [#allocation7], %s307
        %v309 = vld [vmem:[%s308] sm:$0xff]
        %v310 = vld [vmem:[%s308 + $0x8] sm:$0xff]
        %vm311 = vcmask 261120
        %v313 = vsel %vm311, %v306, 0
        %v316 = vsel %vm311, %v309, 0
        %v319 = vsel %vm311, %v310, 0
        %321 = vmatprep.subr.mxu0 0.0
        %322 = vmatpush1.xpose.msra.mxu0 %v316
        %323 = vmatprep.subr.mxu0 0.0
        %324 = vmatpush1.xpose.msra.mxu0 %v319
        %325 = vmatprep.subr.mxu0 0.0
        %326 = vmatpush1.xpose.msra.mxu0 0.0
        %327 = vmatprep.subr.mxu0 0.0
        %328 = vmatpush1.xpose.msra.mxu0 0.0
        %329 = vmatprep.subr.mxu0 0.0
        %330 = vmatpush1.xpose.msra.mxu0 0.0
        %331 = vmatprep.subr.mxu0 0.0
        %332 = vmatpush1.xpose.msra.mxu0 0.0
        %333 = vmatprep.subr.mxu0 0.0
        %334 = vmatpush1.xpose.msra.mxu0 0.0
        %335 = vmatprep.subr.mxu0 0.0
        %336 = vmatpush1.xpose.msra.mxu0 0.0
        %337 = vmatprep.subr.mxu0 0.0
        %338 = vmatpush1.xpose.msra.mxu0 0.0
        %339 = vmatprep.subr.mxu0 0.0
        %340 = vmatpush1.xpose.msra.mxu0 0.0
        %341 = vmatprep.subr.mxu0 0.0
        %342 = vmatpush1.xpose.msra.mxu0 0.0
        %343 = vmatprep.subr.mxu0 0.0
        %344 = vmatpush1.xpose.msra.mxu0 0.0
        %345 = vmatprep.subr.mxu0 0.0
        %346 = vmatpush1.xpose.msra.mxu0 0.0
        %347 = vmatprep.subr.mxu0 0.0
        %348 = vmatpush1.xpose.msra.mxu0 0.0
        %349 = vmatprep.subr.mxu0 0.0
        %350 = vmatpush1.xpose.msra.mxu0 0.0
        %351 = vmatprep.subr.mxu0 0.0
        %352 = vmatpush1.xpose.msra.mxu0 0.0
        %353 = vmatprep.subr.mxu0 0.0
        %354 = vmatpush1.xpose.msra.mxu0 0.0
        %355 = vmatprep.subr.mxu0 0.0
        %356 = vmatpush1.xpose.msra.mxu0 0.0
        %357 = vmatprep.subr.mxu0 0.0
        %358 = vmatpush1.xpose.msra.mxu0 0.0
        %359 = vmatprep.subr.mxu0 0.0
        %360 = vmatpush1.xpose.msra.mxu0 0.0
        %361 = vmatprep.subr.mxu0 0.0
        %362 = vmatpush1.xpose.msra.mxu0 0.0
        %363 = vmatprep.subr.mxu0 0.0
        %364 = vmatpush1.xpose.msra.mxu0 0.0
        %365 = vmatprep.subr.mxu0 0.0
        %366 = vmatpush1.xpose.msra.mxu0 0.0
        %367 = vmatprep.subr.mxu0 0.0
        %368 = vmatpush1.xpose.msra.mxu0 0.0
        %369 = vmatprep.subr.mxu0 0.0
        %370 = vmatpush1.xpose.msra.mxu0 0.0
        %371 = vmatprep.subr.mxu0 0.0
        %372 = vmatpush1.xpose.msra.mxu0 0.0
        %373 = vmatprep.subr.mxu0 0.0
        %374 = vmatpush1.xpose.msra.mxu0 0.0
        %375 = vmatprep.subr.mxu0 0.0
        %376 = vmatpush1.xpose.msra.mxu0 0.0
        %377 = vmatprep.subr.mxu0 0.0
        %378 = vmatpush1.xpose.msra.mxu0 0.0
        %379 = vmatprep.subr.mxu0 0.0
        %380 = vmatpush1.xpose.msra.mxu0 0.0
        %381 = vmatprep.subr.mxu0 0.0
        %382 = vmatpush1.xpose.msra.mxu0 0.0
        %383 = vmatprep.subr.mxu0 0.0
        %384 = vmatpush1.xpose.msra.mxu0 0.0
        %385 = vmatprep.mubr.f32.mxu0 0.0
        %386 = vmatmul.mubr.f32.gmra.mrb[0].mxu0 %v313
        %v387 = vpop.f32.mrb[0].mxu0
        %v388 = vadd.f32 0.0, %v387
        %v389 = vpop.f32.mrb[0].mxu0
        %390 = vdwg.mxu0
        %s391 = smul.u32 %s25, 8
        %s392 = sadd.s32 %s307, 16
        %p393 = scmp.lt.s32.totalorder %s391, %s392
        %s394 = sadd.s32 %s391, 8
        %p395 = scmp.lt.s32.totalorder %s307, %s394
        %p396 = pnand %p393, %p395
        %p397 = pneg %p396
        // Predicated region
        $region49: #{tpu_custom_call.1} parent=31 // pred_check
          _
        $region50: #{tpu_custom_call.1} parent=31 // pred_check_branch
          %399 = sbr.rel (%p396) target = $region52
        $region51: #{tpu_custom_call.1} parent=31 // pred_region
          %v400 = vlaneseq
          %v401 = vshrl.u32 %v400, 7
          %v402 = vstv %s391
          %v403 = vadd.s32 %v402, %v401
          %v404 = vlaneseq
          %v405 = vand.u32 %v404, 127
          %v406 = vstv %s307
          %v407 = vadd.s32 %v406, %v405
          %vm408 = vcmp.eq.s32.totalorder %v403, %v407
          %v409 = vsel %vm408, -1e+30, %v388
          %v410 = vld [vmem:[#allocation2] sm:$0xff]
          %vm411 = vcmask 130048
          %v412 = vsel %vm411, %v409, -inf
          %413 = vmax.xlane.f32.xlu0 %v412
          %v414 = vpop.xlane.xlu0 %413
          %v415 = vmax.f32 %v410, %v414
          %v416 = vld [vmem:[#allocation3] sm:$0xff]
          %v417 = vsub.f32 %v410, %v415
          %v418 = vmul.f32 %v417, 1.442695
          %v419 = vpow.pop %v418
          %v420 = vmul.f32 %v416, %v419
          %422 = vset.pattern.permute.xlu0 0
          %423 = vperm.xlu0 %422, %v415
          %v424 = vpop.permute.xlu0 %423
          %v426 = vsub.f32 %v409, %v424
          %v427 = vmul.f32 %v426, 1.442695
          %v428 = vpow.pop %v427
          %v429 = vsel %vm411, %v428, 0.0
          %430 = vadd.xlane.f32.xlu0 %v429
          %v431 = vpop.xlane.xlu0 %430
          %v432 = vadd.f32 %v420, %v431
          %vm433 = vcmask 7168
          %434 = vst.msk [vmem:[#allocation3] sm:$0xff] %vm433, %v432
          %435 = vst.msk [vmem:[#allocation2] sm:$0xff] %vm433, %v415
        $region52: #{tpu_custom_call.1} parent=31 // pred_fallthru
          _
        %p436 = pneg %p397
        // Predicated region
        $region53: #{tpu_custom_call.1} parent=31 // pred_check
          _
        $region54: #{tpu_custom_call.1} parent=31 // pred_check_branch
          %438 = sbr.rel (%p397) target = $region56
        $region55: #{tpu_custom_call.1} parent=31 // pred_region
          %v439 = vld [vmem:[#allocation2] sm:$0xff]
          %vm440 = vcmask 130048
          %v441 = vsel %vm440, %v388, -inf
          %442 = vmax.xlane.f32.xlu0 %v441
          %v443 = vpop.xlane.xlu0 %442
          %v444 = vmax.f32 %v439, %v443
          %v445 = vld [vmem:[#allocation3] sm:$0xff]
          %v446 = vsub.f32 %v439, %v444
          %v447 = vmul.f32 %v446, 1.442695
          %v448 = vpow.pop %v447
          %v449 = vmul.f32 %v445, %v448
          %451 = vset.pattern.permute.xlu0 0
          %452 = vperm.xlu0 %451, %v444
          %v453 = vpop.permute.xlu0 %452
          %v455 = vsub.f32 %v388, %v453
          %v456 = vmul.f32 %v455, 1.442695
          %v457 = vpow.pop %v456
          %v458 = vsel %vm440, %v457, 0.0
          %459 = vadd.xlane.f32.xlu0 %v458
          %v460 = vpop.xlane.xlu0 %459
          %v461 = vadd.f32 %v449, %v460
          %vm462 = vcmask 7168
          %463 = vst.msk [vmem:[#allocation3] sm:$0xff] %vm462, %v461
          %464 = vst.msk [vmem:[#allocation2] sm:$0xff] %vm462, %v444
        $region56: #{tpu_custom_call.1} parent=31 // pred_fallthru
          _
        // Predicated region
        $region57: #{tpu_custom_call.1} parent=31 // pred_check
          %p465 = pneg %p299
        $region58: #{tpu_custom_call.1} parent=31 // pred_check_branch
          %467 = sbr.rel (%p465) target = $region60
        $region59: #{tpu_custom_call.1} parent=31 // pred_region
          %v468 = vld [vmem:[%s258] sm:$0xff]
          %v469 = vmul.f32 %v306, %v468
          %v470 = vsel %vm311, %v469, 0.0
          %471 = vadd.xlane.f32.xlu0 %v470
          %v472 = vpop.xlane.xlu0 %471
          %v473 = vld [vmem:[#allocation2] sm:$0xff]
          %v474 = vld [vmem:[#allocation3] sm:$0xff]
          %v475 = vlog2.pop %v474
          %v476 = vmul.f32 %v475, 0.6931472
          %v477 = vadd.f32 %v473, %v476
          %v478 = vsub.f32 %v477, %v472
          %480 = vset.pattern.permute.xlu0 0
          %481 = vperm.xlu0 %480, %v478
          %v482 = vpop.permute.xlu0 %481
          %484 = vst [vmem:[%s285] sm:$0xff] %v482
        $region60: #{tpu_custom_call.1} parent=31 // pred_fallthru
          _
        %s485 = sand.u32 %s140, 1
        %s486 = scalar_lea.sflag [#allocation6], %s485
        %s487 = sand.u32 %s140, 1
        %s488 = smul.addr %s487, 8
        %s489 = scalar_lea.vmem [#allocation10], %s488
        // Predicated region
        $region61: #{tpu_custom_call.1} parent=31 // pred_check
          %p490 = pneg %p150
        $region62: #{tpu_custom_call.1} parent=31 // pred_check_branch
          %492 = sbr.rel (%p490) target = $region64
        $region63: #{tpu_custom_call.1} parent=31 // pred_region
          %s494 = ssub.s32 128, 128
          %495 = vsyncadd %s486, %s494
          %s496 = smul.addr %s25, 128
          %s497 = scalar_lea.hbm %s3, %s496
          %s499 = sshll.u32 %s489, 4
          %s500 = int_to_ptr.vmem [resolvable:$true] %s499
          %502 = dma.vmem_to_hbm [thread:$0]  %s500, 128, %s497, %s486
        $region64: #{tpu_custom_call.1} parent=31 // pred_fallthru
          _
      $region32: #{tpu_custom_call.1} parent=5 // pred_fallthru
        _
      %p503 = scmp.le.s32.totalorder 2, %s16
      // Predicated region
      $region65: #{tpu_custom_call.1} parent=5 // pred_check
        %p504 = pneg %p503
      $region66: #{tpu_custom_call.1} parent=5 // pred_check_branch
        %506 = sbr.rel (%p504) target = $region68
      $region67: #{tpu_custom_call.1} parent=5 // pred_region
        %s507 = ssub.s32 %s16, 2
        // Predicated region
        $region69: #{tpu_custom_call.1} parent=67 // pred_check
          %p508 = pneg %p156
        $region70: #{tpu_custom_call.1} parent=67 // pred_check_branch
          %510 = sbr.rel (%p508) target = $region72
        $region71: #{tpu_custom_call.1} parent=67 // pred_region
          %s511 = sand.u32 %s141, 1
          %s512 = scalar_lea.sflag [#allocation6], %s511
          %s513 = sand.u32 %s141, 1
          %s514 = smul.addr %s513, 8
          %s515 = scalar_lea.vmem [#allocation10], %s514
          %516 = dma.done %s512, 128
        $region72: #{tpu_custom_call.1} parent=67 // pred_fallthru
          _
      $region68: #{tpu_custom_call.1} parent=5 // pred_fallthru
        _
    $region6: #{tpu_custom_call.1} parent=1 // loop_footer
      %s20 = sadd.s32 1, %s16
    $region7: #{tpu_custom_call.1} parent=1 // loop_footer_branch
      %15 = sbr.rel target = $region3
    $region8: #{tpu_custom_call.1} parent=1 // loop_exit
      _
    %517 = vsyncpa [#allocation5], 1
    %s518 = scalar_lea.sflag [#allocation5], 1
    %519 = vsyncpa %s518, 1
    %520 = vsyncpa [#allocation8], 1
    %521 = vsyncpa [#allocation6], 1
    %s522 = scalar_lea.sflag [#allocation6], 1
    %523 = vsyncpa %s522, 1

</llo_original>
